<compile_context>
chip_gen: v6e
topology: v6e:2x2x1
jax: 0.10.0
libtpu: 0.0.40
codegen_flags: <defaults>
</compile_context>

<pallas_src>
import functools

import jax
import jax.numpy as jnp
from jax import lax
from jax.experimental import pallas as pl
from jax.experimental.pallas import tpu as pltpu


# Conservative VMEM working-set target: v7x has 64 MiB per TensorCore
# (v5e/v6e have 128 MiB, so this is never the binding limit there).
_VMEM_TARGET_BYTES = 40 << 20


def _vq_kernel(z_ref, w_ref, bias_ref, *out_refs, bf16_scores, fuse_gather):
    """One row-tile of the VQ forward.

    z_ref:    (tm, D) tile of flattened NHWC inputs
    w_ref:    (N, D)  full codebook, resident across grid steps
    bias_ref: (1, N)  precomputed -0.5 * ||w_j||^2 (hoisted out of the grid loop)
    out_refs: (zq_ref (tm, D), idx_ref (1, tm)) if fuse_gather else (idx_ref,)
    """
    if fuse_gather:
        zq_ref, idx_ref = out_refs
    else:
        (idx_ref,) = out_refs

    z = z_ref[...].astype(jnp.float32)          # (tm, D)
    w = w_ref[...].astype(jnp.float32)          # (N, D)
    bias = bias_ref[...]                        # (1, N), f32
    tm, n = z.shape[0], w.shape[0]

    # argmin_j ||z - w_j||^2  ==  argmax_j ( z . w_j - 0.5 * ||w_j||^2 )
    # (||z||^2 is constant per row -> dropped; ||w||^2 hoisted into `bias`.)
    if bf16_scores:
        # Full-rate bf16 MXU matmul; only near-tie rows can flip the argmax.
        zs, ws = z.astype(jnp.bfloat16), w.astype(jnp.bfloat16)
    else:
        zs, ws = z, w
    zw = lax.dot_general(zs, ws, (((1,), (1,)), ((), ())),
                         preferred_element_type=jnp.float32)      # (tm, N)
    score = zw + bias                                             # f32
    idx = jnp.argmax(score, axis=1).astype(jnp.int32)             # (tm,)

    # Lane-dense index store: one (1, tm) slice of the (1, M_pad) output row.
    idx_ref[...] = idx[None, :]

    if fuse_gather:
        # Exact lookup z_q = weight[idx] as a one-hot matmul ("MXU gather").
        # Kept in f32 so results are bit-exact codebook rows.  Only used for
        # small codebooks; for large N the wrapper gathers weight[idx] instead
        # (this matmul would otherwise double the MXU MACs for data movement).
        one_hot = (lax.broadcasted_iota(jnp.int32, (tm, n), 1)
                   == idx[:, None]).astype(jnp.float32)           # (tm, N)
        zq = jnp.dot(one_hot, w, preferred_element_type=jnp.float32)
        zq_ref[...] = zq.astype(zq_ref.dtype)


def _pick_tm(m, cap=1024):
    """Row-tile size.

    * multiple of 128 whenever M > 128 so the (1, tm) index stores are
      lane-dense (unmasked vst);
    * at most ~M/2 so the 'parallel' row axis has >= 2 grid steps and can be
      sharded across both TensorCores on v7x (the extra step costs ~0.35 us,
      negligible on single-TC v5e/v6e);
    * tiny problems (M <= 128) use a single 8-aligned tile (overhead-dominated
      anyway).
    """
    if m <= 128:
        return -(-m // 8) * 8
    half = max(128, ((m // 2) // 128) * 128)
    return min(cap, half)


def _vmem_bytes_estimate(tm, d, n, fuse_gather):
    """Rough VMEM footprint: pipelined tiles + resident constants + (tm, N)
    f32 intermediates (score / one-hot).  Constants are counted double-buffered
    (worst case, i.e. if the Buffered(1) request is not honored)."""
    f32 = 4
    z_in = 2 * tm * d * f32
    zq_out = 2 * tm * d * f32 if fuse_gather else 0
    idx_out = 2 * 8 * tm * f32               # (1, tm) block padded to 8 sublanes
    codebook = 2 * n * d * f32
    bias = 2 * 8 * n * f32
    inter = (3 if fuse_gather else 2) * tm * n * f32
    return z_in + zq_out + idx_out + codebook + bias + inter


def ema_vector_quantizer_forward(z_nchw, weight, *, tm=None, tm_cap=1024,
                                 bf16_scores=False, fuse_gather=None):
    """Forward of EMAVectorQuantizer.

    Args:
      z_nchw: (B, C, H, W) input, C == codebook_dim.
      weight: (num_tokens, codebook_dim) EMA codebook buffer.
      tm: optional row-tile override (multiple of 8).
      tm_cap: cap for the automatic tile picker.
      bf16_scores: run the distance matmul with bf16 operands (full MXU rate);
        argmax near-ties may resolve differently from the exact f32 reference.
      fuse_gather: compute z_q inside the kernel via a one-hot matmul (exact,
        saves an HBM round trip; sensible for small N).  Defaults to N <= 1024;
        for larger codebooks the wrapper gathers weight[idx] instead.

    Returns:
      (z, z_q, encoding_indices) with shapes (B, H*W, C), (B, H*W, C), (B, H*W).
      Indices are int32 (PyTorch returns int64; int32 is enough for forward).
    """
    B, C, H, W = z_nchw.shape
    N, D = weight.shape
    assert D == C
    if fuse_gather is None:
        fuse_gather = N <= 1024

    # glue: b c h w -> b h w c -> (M, C)
    z_bhwc = jnp.transpose(z_nchw, (0, 2, 3, 1))
    z_flat = z_bhwc.reshape(-1, C)
    M = z_flat.shape[0]

    if tm is None:
        tm = _pick_tm(M, cap=tm_cap)
        # Shrink the tile until the estimated working set fits the VMEM target
        # (matters for large N / D; a no-op at toy sizes).
        while tm > 128 and _vmem_bytes_estimate(tm, C, N, fuse_gather) > _VMEM_TARGET_BYTES:
            tm = max(128, (tm // 256) * 128)
    assert tm % 8 == 0 or tm == M

    # Pad rows to a multiple of tm; tail rows are sliced off afterwards.
    m_pad = -(-M // tm) * tm
    z_in = z_flat if m_pad == M else jnp.pad(z_flat, ((0, m_pad - M), (0, 0)))
    n_tiles = m_pad // tm

    # Hoisted codebook norm (computed once, outside the grid loop).
    w_f32 = weight.astype(jnp.float32)
    w_bias = (-0.5 * jnp.sum(w_f32 * w_f32, axis=1)).reshape(1, N)

    est = _vmem_bytes_estimate(tm, C, N, fuse_gather)
    vmem_limit = int(min(max(est + (4 << 20), 16 << 20),
                         max(_VMEM_TARGET_BYTES, est + (2 << 20))))

    kernel = functools.partial(_vq_kernel, bf16_scores=bf16_scores,
                               fuse_gather=fuse_gather)

    if fuse_gather:
        out_shape = (jax.ShapeDtypeStruct((m_pad, C), z_flat.dtype),
                     jax.ShapeDtypeStruct((1, m_pad), jnp.int32))
        out_specs = (pl.BlockSpec((tm, C), lambda i: (i, 0)),    # z_q tile
                     pl.BlockSpec((1, tm), lambda i: (0, i)))    # lane-dense idx
    else:
        out_shape = (jax.ShapeDtypeStruct((1, m_pad), jnp.int32),)
        out_specs = (pl.BlockSpec((1, tm), lambda i: (0, i)),)

    def _call(single_buffer_consts):
        # Codebook + bias have constant index maps, so one buffer is enough;
        # pl.Buffered(1) halves their resident VMEM.
        const_kw = ({"pipeline_mode": pl.Buffered(1)}
                    if single_buffer_consts else {})
        return pl.pallas_call(
            kernel,
            out_shape=out_shape,
            grid_spec=pltpu.PrefetchScalarGridSpec(
                num_scalar_prefetch=0,
                grid=(n_tiles,),
                in_specs=[
                    pl.BlockSpec((tm, C), lambda i: (i, 0)),             # z tile
                    pl.BlockSpec((N, C), lambda i: (0, 0), **const_kw),  # codebook
                    pl.BlockSpec((1, N), lambda i: (0, 0), **const_kw),  # -0.5||w||^2
                ],
                out_specs=out_specs,
            ),
            compiler_params=pltpu.CompilerParams(
                dimension_semantics=("parallel",),
                vmem_limit_bytes=vmem_limit,
            ),
        )(z_in, weight, w_bias)

    try:
        outs = _call(True)
    except Exception:
        # Fallback for JAX builds where pl.Buffered(1) isn't supported by the
        # TPU pallas_call pipeliner; default double-buffering is still correct,
        # it just spends 2x VMEM on the constant codebook/bias.
        outs = _call(False)

    if fuse_gather:
        zq_pad, idx_row = outs
        idx_flat = idx_row.reshape(m_pad)[:M]
        zq_flat = zq_pad[:M]
    else:
        (idx_row,) = outs
        idx_flat = idx_row.reshape(m_pad)[:M]
        zq_flat = jnp.take(weight, idx_flat, axis=0)   # large-N path: plain gather

    # glue: module output conventions (z_q.detach() is a forward no-op).
    z_out = z_flat.reshape(B, H * W, C)
    zq_out = zq_flat.reshape(B, H * W, C)
    idx_out = idx_flat.reshape(B, H * W)
    return z_out, zq_out, idx_out


def _reference(z_nchw, weight):
    """Pure-JAX reference mirroring the PyTorch forward (elementwise distances,
    no MXU, so the reference itself is ~exact f32)."""
    B, C, H, W = z_nchw.shape
    z = jnp.transpose(z_nchw, (0, 2, 3, 1))
    zf = z.reshape(-1, C)
    d = jnp.sum((zf[:, None, :] - weight[None, :, :]) ** 2, axis=-1)
    idx = jnp.argmin(d, axis=1)
    zq = jnp.take(weight, idx, axis=0)
    return (z.reshape(B, H * W, C), zq.reshape(B, H * W, C), idx.reshape(B, H * W))


if __name__ == "__main__":
    num_tokens = 128
    codebook_dim = 32

    key = jax.random.PRNGKey(0)
    k_w, k_z1, k_z2 = jax.random.split(key, 3)
    # EmbeddingEMA.__init__: weight = torch.randn(num_tokens, codebook_dim)
    weight = jax.random.normal(k_w, (num_tokens, codebook_dim), dtype=jnp.float32)

    # Case 1: toy module shapes (B=2, C=32, H=W=8 -> M=128, single tile).
    z1 = jax.random.normal(k_z1, (2, codebook_dim, 8, 8), dtype=jnp.float32)
    out1 = ema_vector_quantizer_forward(z1, weight)
    jax.block_until_ready(out1)
    ref1 = _reference(z1, weight)
    assert jnp.allclose(out1[0], ref1[0], atol=1e-5)
    assert jnp.allclose(out1[1], ref1[1], atol=1e-5)
    assert jnp.array_equal(out1[2], ref1[2].astype(jnp.int32))

    # Case 2: awkward spatial size (H=W=9 -> M=162): exercises row padding and
    # a multi-step grid (2 tiles of 128 rows), i.e. the n_tiles > 1 index path.
    z2 = jax.random.normal(k_z2, (2, codebook_dim, 9, 9), dtype=jnp.float32)
    out2 = ema_vector_quantizer_forward(z2, weight)
    jax.block_until_ready(out2)
    ref2 = _reference(z2, weight)
    assert jnp.allclose(out2[0], ref2[0], atol=1e-5)
    assert jnp.allclose(out2[1], ref2[1], atol=1e-5)
    assert jnp.array_equal(out2[2], ref2[2].astype(jnp.int32))

    # Case 3: bf16-score matmul + wrapper-side gather (the large-N config).
    # Near-tie rows may pick a different (equally good) code, so check that
    # the selected codes are near-optimal in squared distance.
    out3 = ema_vector_quantizer_forward(z1, weight, bf16_scores=True,
                                        fuse_gather=False)
    jax.block_until_ready(out3)
    zf = jnp.transpose(z1, (0, 2, 3, 1)).reshape(-1, codebook_dim)
    d = jnp.sum((zf[:, None, :] - weight[None, :, :]) ** 2, axis=-1)
    d_min = jnp.min(d, axis=1)
    d_sel = jnp.take_along_axis(d, out3[2].reshape(-1, 1), axis=1)[:, 0]
    assert bool(jnp.all(d_sel <= d_min + 0.5))

    print("KERNEL_OK")
</pallas_src>

<mosaic_0001>
module attributes {stable_mosaic.version = 11 : i64} {
  func.func @_vq_kernel(%arg0: i32, %arg1: memref<128x32xf32, #tpu.memory_space<vmem>>, %arg2: memref<128x32xf32, #tpu.memory_space<vmem>>, %arg3: memref<1x128xf32, #tpu.memory_space<vmem>>, %arg4: memref<128x32xf32, #tpu.memory_space<vmem>>, %arg5: memref<1x128xi32, #tpu.memory_space<vmem>>) attributes {dimension_semantics = [#tpu.dimension_semantics<parallel>], iteration_bounds = array<i64: 1>, scalar_prefetch = 0 : i64, scratch_operands = 0 : i64, tpu.core_type = #tpu.core_type<tc>, window_params = [{transform_indices = @transform_0, window_bounds = array<i64: 128, 32>}, {pipeline_mode = #tpu.pipeline_mode<synchronous>, transform_indices = @transform_1, window_bounds = array<i64: 128, 32>}, {pipeline_mode = #tpu.pipeline_mode<synchronous>, transform_indices = @transform_2, window_bounds = array<i64: 1, 128>}, {transform_indices = @transform_3, window_bounds = array<i64: 128, 32>}, {transform_indices = @transform_4, window_bounds = array<i64: 1, 128>}]} {
    %c0 = arith.constant 0 : index
    %c0_0 = arith.constant 0 : index
    %0 = vector.load %arg1[%c0, %c0_0] : memref<128x32xf32, #tpu.memory_space<vmem>>, vector<128x32xf32>
    %c0_1 = arith.constant 0 : index
    %c0_2 = arith.constant 0 : index
    %1 = vector.load %arg2[%c0_1, %c0_2] : memref<128x32xf32, #tpu.memory_space<vmem>>, vector<128x32xf32>
    %c0_3 = arith.constant 0 : index
    %c0_4 = arith.constant 0 : index
    %2 = vector.load %arg3[%c0_3, %c0_4] : memref<1x128xf32, #tpu.memory_space<vmem>>, vector<1x128xf32>
    %cst = arith.constant dense<0.000000e+00> : vector<128x128xf32>
    %3 = tpu.matmul %0, %1, %cst {dimension_numbers = #tpu.dot_dimension_numbers<[1], [1], [0], [0], [0, 0, 1, 0], [], []>} : vector<128x32xf32>, vector<128x32xf32>, vector<128x128xf32> -> vector<128x128xf32>
    %4 = vector.broadcast %2 : vector<1x128xf32> to vector<128x128xf32>
    %5 = arith.addf %3, %4 : vector<128x128xf32>
    %6 = tpu.reduce_index %5 {axis = 1 : i32, kind = #tpu.reduction_kind<arg_max>} : vector<128x128xf32> -> vector<128xi32>
    %7 = vector.shape_cast %6 : vector<128xi32> to vector<1x128xi32>
    %c0_5 = arith.constant 0 : index
    %c0_6 = arith.constant 0 : index
    %8 = vector.load %arg5[%c0_5, %c0_6] : memref<1x128xi32, #tpu.memory_space<vmem>>, vector<1x128xi32>
    tpu.vector_store %arg5[%c0_5, %c0_6], %7 {strides = array<i32>} : memref<1x128xi32, #tpu.memory_space<vmem>>, vector<1x128xi32>,
    %9 = tpu.iota {dimensions = array<i32: 1>} : vector<128x128xi32>
    %10 = vector.shape_cast %6 : vector<128xi32> to vector<128x1xi32>
    %11 = vector.broadcast %10 : vector<128x1xi32> to vector<128x128xi32>
    %12 = arith.cmpi eq, %9, %11 : vector<128x128xi32>
    %13 = arith.extui %12 : vector<128x128xi1> to vector<128x128xi32>
    %14 = arith.sitofp %13 : vector<128x128xi32> to vector<128x128xf32>
    %cst_7 = arith.constant dense<0.000000e+00> : vector<128x32xf32>
    %15 = tpu.matmul %14, %1, %cst_7 {dimension_numbers = #tpu.dot_dimension_numbers<[1], [0], [0], [1], [0, 0, 1, 1], [], []>} : vector<128x128xf32>, vector<128x32xf32>, vector<128x32xf32> -> vector<128x32xf32>
    %c0_8 = arith.constant 0 : index
    %c0_9 = arith.constant 0 : index
    %16 = vector.load %arg4[%c0_8, %c0_9] : memref<128x32xf32, #tpu.memory_space<vmem>>, vector<128x32xf32>
    tpu.vector_store %arg4[%c0_8, %c0_9], %15 {strides = array<i32>} : memref<128x32xf32, #tpu.memory_space<vmem>>, vector<128x32xf32>,
    return
  }
  func.func @transform_0(%arg0: i32) -> (i32, i32) {
    %c0_i32 = arith.constant 0 : i32
    %c0_i32_0 = arith.constant 0 : i32
    return %arg0, %c0_i32 : i32, i32
  }
  func.func @transform_1(%arg0: i32) -> (i32, i32) {
    %c0_i32 = arith.constant 0 : i32
    %c0_i32_0 = arith.constant 0 : i32
    %c0_i32_1 = arith.constant 0 : i32
    return %c0_i32, %c0_i32_0 : i32, i32
  }
  func.func @transform_2(%arg0: i32) -> (i32, i32) {
    %c0_i32 = arith.constant 0 : i32
    %c0_i32_0 = arith.constant 0 : i32
    %c0_i32_1 = arith.constant 0 : i32
    return %c0_i32, %c0_i32_0 : i32, i32
  }
  func.func @transform_3(%arg0: i32) -> (i32, i32) {
    %c0_i32 = arith.constant 0 : i32
    %c0_i32_0 = arith.constant 0 : i32
    return %arg0, %c0_i32 : i32, i32
  }
  func.func @transform_4(%arg0: i32) -> (i32, i32) {
    %c0_i32 = arith.constant 0 : i32
    %c0_i32_0 = arith.constant 0 : i32
    return %c0_i32, %arg0 : i32, i32
  }
}

module attributes {stable_mosaic.version = 11 : i64} {
  func.func @_vq_kernel(%arg0: i32, %arg1: memref<128x32xf32, #tpu.memory_space<vmem>>, %arg2: memref<128x32xf32, #tpu.memory_space<vmem>>, %arg3: memref<1x128xf32, #tpu.memory_space<vmem>>, %arg4: memref<128x32xf32, #tpu.memory_space<vmem>>, %arg5: memref<1x128xi32, #tpu.memory_space<vmem>>) attributes {dimension_semantics = [#tpu.dimension_semantics<parallel>], iteration_bounds = array<i64: 1>, scalar_prefetch = 0 : i64, scratch_operands = 0 : i64, tpu.core_type = #tpu.core_type<tc>, window_params = [{transform_indices = @transform_0, window_bounds = array<i64: 128, 32>}, {pipeline_mode = #tpu.pipeline_mode<synchronous>, transform_indices = @transform_1, window_bounds = array<i64: 128, 32>}, {pipeline_mode = #tpu.pipeline_mode<synchronous>, transform_indices = @transform_2, window_bounds = array<i64: 1, 128>}, {transform_indices = @transform_3, window_bounds = array<i64: 128, 32>}, {transform_indices = @transform_4, window_bounds = array<i64: 1, 128>}]} {
    %c0 = arith.constant 0 : index
    %c0_0 = arith.constant 0 : index
    %0 = vector.load %arg1[%c0, %c0_0] : memref<128x32xf32, #tpu.memory_space<vmem>>, vector<128x32xf32>
    %c0_1 = arith.constant 0 : index
    %c0_2 = arith.constant 0 : index
    %1 = vector.load %arg2[%c0_1, %c0_2] : memref<128x32xf32, #tpu.memory_space<vmem>>, vector<128x32xf32>
    %c0_3 = arith.constant 0 : index
    %c0_4 = arith.constant 0 : index
    %2 = vector.load %arg3[%c0_3, %c0_4] : memref<1x128xf32, #tpu.memory_space<vmem>>, vector<1x128xf32>
    %cst = arith.constant dense<0.000000e+00> : vector<128x128xf32>
    %3 = tpu.matmul %0, %1, %cst {dimension_numbers = #tpu.dot_dimension_numbers<[1], [1], [0], [0], [0, 0, 1, 0], [], []>} : vector<128x32xf32>, vector<128x32xf32>, vector<128x128xf32> -> vector<128x128xf32>
    %4 = vector.broadcast %2 : vector<1x128xf32> to vector<128x128xf32>
    %5 = arith.addf %3, %4 : vector<128x128xf32>
    %6 = tpu.reduce_index %5 {axis = 1 : i32, kind = #tpu.reduction_kind<arg_max>} : vector<128x128xf32> -> vector<128xi32>
    %7 = vector.shape_cast %6 : vector<128xi32> to vector<1x128xi32>
    %c0_5 = arith.constant 0 : index
    %c0_6 = arith.constant 0 : index
    %8 = vector.load %arg5[%c0_5, %c0_6] : memref<1x128xi32, #tpu.memory_space<vmem>>, vector<1x128xi32>
    tpu.vector_store %arg5[%c0_5, %c0_6], %7 {strides = array<i32>} : memref<1x128xi32, #tpu.memory_space<vmem>>, vector<1x128xi32>,
    %9 = tpu.iota {dimensions = array<i32: 1>} : vector<128x128xi32>
    %10 = vector.shape_cast %6 : vector<128xi32> to vector<128x1xi32>
    %11 = vector.broadcast %10 : vector<128x1xi32> to vector<128x128xi32>
    %12 = arith.cmpi eq, %9, %11 : vector<128x128xi32>
    %13 = arith.extui %12 : vector<128x128xi1> to vector<128x128xi32>
    %14 = arith.sitofp %13 : vector<128x128xi32> to vector<128x128xf32>
    %cst_7 = arith.constant dense<0.000000e+00> : vector<128x32xf32>
    %15 = tpu.matmul %14, %1, %cst_7 {dimension_numbers = #tpu.dot_dimension_numbers<[1], [0], [0], [1], [0, 0, 1, 1], [], []>} : vector<128x128xf32>, vector<128x32xf32>, vector<128x32xf32> -> vector<128x32xf32>
    %c0_8 = arith.constant 0 : index
    %c0_9 = arith.constant 0 : index
    %16 = vector.load %arg4[%c0_8, %c0_9] : memref<128x32xf32, #tpu.memory_space<vmem>>, vector<128x32xf32>
    tpu.vector_store %arg4[%c0_8, %c0_9], %15 {strides = array<i32>} : memref<128x32xf32, #tpu.memory_space<vmem>>, vector<128x32xf32>,
    return
  }
  func.func @transform_0(%arg0: i32) -> (i32, i32) {
    %c0_i32 = arith.constant 0 : i32
    %c0_i32_0 = arith.constant 0 : i32
    return %arg0, %c0_i32 : i32, i32
  }
  func.func @transform_1(%arg0: i32) -> (i32, i32) {
    %c0_i32 = arith.constant 0 : i32
    %c0_i32_0 = arith.constant 0 : i32
    %c0_i32_1 = arith.constant 0 : i32
    return %c0_i32, %c0_i32_0 : i32, i32
  }
  func.func @transform_2(%arg0: i32) -> (i32, i32) {
    %c0_i32 = arith.constant 0 : i32
    %c0_i32_0 = arith.constant 0 : i32
    %c0_i32_1 = arith.constant 0 : i32
    return %c0_i32, %c0_i32_0 : i32, i32
  }
  func.func @transform_3(%arg0: i32) -> (i32, i32) {
    %c0_i32 = arith.constant 0 : i32
    %c0_i32_0 = arith.constant 0 : i32
    return %arg0, %c0_i32 : i32, i32
  }
  func.func @transform_4(%arg0: i32) -> (i32, i32) {
    %c0_i32 = arith.constant 0 : i32
    %c0_i32_0 = arith.constant 0 : i32
    return %c0_i32, %arg0 : i32, i32
  }
}

</mosaic_0001>

<llo_original>
// kernel: tpu_custom_call.1
$region0: #{tpu_custom_call.1}
  #allocation0 [shape = 'u32[]', space=smem, size = 0x4, offset = 0x4, fixed_abs, tag = 'smem constant byte address 0x4 - core index']
  #allocation1 [shape = 'u32[144,128]{1,0:T(1,128)}', space=vmem, size = 0x12000, scoped, tag = 'internal scratch']
  %s0 = inlined_call_operand.vmem [shape: f32[128,32], index: 0, kind: input, shape index: {}]
  %s1 = inlined_call_operand.vmem [shape: f32[128,32], index: 1, kind: input, shape index: {}]
  %s2 = inlined_call_operand.vmem [shape: f32[1,128], index: 2, kind: input, shape index: {}]
  %s3 = inlined_call_operand.vmem [shape: f32[128,32], index: 3, kind: output, shape index: {0}]
  %s4 = inlined_call_operand.hbm [shape: s32[1,128], index: 4, kind: output, shape index: {1}]
  %5 = xla_tuple %s3, %s4
  %s6 = sld [smem:[#allocation0]]
  $region30: #{tpu_custom_call.1} parent=0
    _
  %s8 = ssub.s32 1, %s6
  %s9 = scalar_select 0, %s8, %s6
  $region1: #{tpu_custom_call.1} parent=0
    #allocation2 [shape = 'u8[512]{0}', space=vmem, size = 0x400, scoped, tag = 'output window, operand 1, single buffered']
    #allocation3 [shape = 's32[1]{0}', space=sflag, size = 0x4, scoped, tag = 'scoped memory for tpu_custom_call.1']
    %10 = vsyncpa [#allocation3], 0
    // Predicated region
    $region2: #{tpu_custom_call.1} parent=1 // pred_check
      _
    $region3: #{tpu_custom_call.1} parent=1 // pred_check_branch
      %12 = sbr.rel (0) target = $region5
    $region4: #{tpu_custom_call.1} parent=1 // pred_region
      _
    $region5: #{tpu_custom_call.1} parent=1 // pred_fallthru
      _
    // Predicated region
    $region6: #{tpu_custom_call.1} parent=1 // pred_check
      _
    $region7: #{tpu_custom_call.1} parent=1 // pred_check_branch
      %14 = sbr.rel (0) target = $region9
    $region8: #{tpu_custom_call.1} parent=1 // pred_region
      _
    $region9: #{tpu_custom_call.1} parent=1 // pred_fallthru
      _
    // Predicated region
    $region10: #{tpu_custom_call.1} parent=1 // pred_check
      _
    $region11: #{tpu_custom_call.1} parent=1 // pred_check_branch
      %16 = sbr.rel (0) target = $region13
    $region12: #{tpu_custom_call.1} parent=1 // pred_region
      _
    $region13: #{tpu_custom_call.1} parent=1 // pred_fallthru
      _
    %v17 = vld [vmem:[%s0] sm:$0xff]
    %v18 = vld [vmem:[%s0 + $0x8] sm:$0xff]
    %v19 = vld [vmem:[%s0 + $0x10] sm:$0xff]
    %v20 = vld [vmem:[%s0 + $0x18] sm:$0xff]
    %v21 = vld [vmem:[%s0 + $0x20] sm:$0xff]
    %v22 = vld [vmem:[%s0 + $0x28] sm:$0xff]
    %v23 = vld [vmem:[%s0 + $0x30] sm:$0xff]
    %v24 = vld [vmem:[%s0 + $0x38] sm:$0xff]
    %v25 = vld [vmem:[%s0 + $0x40] sm:$0xff]
    %v26 = vld [vmem:[%s0 + $0x48] sm:$0xff]
    %v27 = vld [vmem:[%s0 + $0x50] sm:$0xff]
    %v28 = vld [vmem:[%s0 + $0x58] sm:$0xff]
    %v29 = vld [vmem:[%s0 + $0x60] sm:$0xff]
    %v30 = vld [vmem:[%s0 + $0x68] sm:$0xff]
    %v31 = vld [vmem:[%s0 + $0x70] sm:$0xff]
    %v32 = vld [vmem:[%s0 + $0x78] sm:$0xff]
    %v33 = vld [vmem:[%s1] sm:$0xff]
    %v34 = vld [vmem:[%s1 + $0x8] sm:$0xff]
    %v35 = vld [vmem:[%s1 + $0x10] sm:$0xff]
    %v36 = vld [vmem:[%s1 + $0x18] sm:$0xff]
    %v37 = vld [vmem:[%s1 + $0x20] sm:$0xff]
    %v38 = vld [vmem:[%s1 + $0x28] sm:$0xff]
    %v39 = vld [vmem:[%s1 + $0x30] sm:$0xff]
    %v40 = vld [vmem:[%s1 + $0x38] sm:$0xff]
    %v41 = vld [vmem:[%s1 + $0x40] sm:$0xff]
    %v42 = vld [vmem:[%s1 + $0x48] sm:$0xff]
    %v43 = vld [vmem:[%s1 + $0x50] sm:$0xff]
    %v44 = vld [vmem:[%s1 + $0x58] sm:$0xff]
    %v45 = vld [vmem:[%s1 + $0x60] sm:$0xff]
    %v46 = vld [vmem:[%s1 + $0x68] sm:$0xff]
    %v47 = vld [vmem:[%s1 + $0x70] sm:$0xff]
    %v48 = vld [vmem:[%s1 + $0x78] sm:$0xff]
    %v49 = vld [vmem:[%s2] sm:$0x1]
    %v51 = vlaneseq
    %v52 = vshrl.u32 %v51, 7
    %v53 = vsub.s32 0, %v52
    %v54 = vrot.slane %v49, %v53
    %vm56 = vcmask 261120
    %v58 = vsel %vm56, %v17, 0
    %v61 = vsel %vm56, %v18, 0
    %v64 = vsel %vm56, %v19, 0
    %v67 = vsel %vm56, %v20, 0
    %v70 = vsel %vm56, %v21, 0
    %v73 = vsel %vm56, %v22, 0
    %v76 = vsel %vm56, %v23, 0
    %v79 = vsel %vm56, %v24, 0
    %v82 = vsel %vm56, %v25, 0
    %v85 = vsel %vm56, %v26, 0
    %v88 = vsel %vm56, %v27, 0
    %v91 = vsel %vm56, %v28, 0
    %v94 = vsel %vm56, %v29, 0
    %v97 = vsel %vm56, %v30, 0
    %v100 = vsel %vm56, %v31, 0
    %v103 = vsel %vm56, %v32, 0
    %v106 = vsel %vm56, %v33, 0
    %v109 = vsel %vm56, %v34, 0
    %v112 = vsel %vm56, %v35, 0
    %v115 = vsel %vm56, %v36, 0
    %v118 = vsel %vm56, %v37, 0
    %v121 = vsel %vm56, %v38, 0
    %v124 = vsel %vm56, %v39, 0
    %v127 = vsel %vm56, %v40, 0
    %v130 = vsel %vm56, %v41, 0
    %v133 = vsel %vm56, %v42, 0
    %v136 = vsel %vm56, %v43, 0
    %v139 = vsel %vm56, %v44, 0
    %v142 = vsel %vm56, %v45, 0
    %v145 = vsel %vm56, %v46, 0
    %v148 = vsel %vm56, %v47, 0
    %v151 = vsel %vm56, %v48, 0
    %153 = vmatprep.subr.mxu0 0.0
    %154 = vmatpush1.xpose.msra.mxu0 %v151
    %155 = vmatprep.subr.mxu0 0.0
    %156 = vmatpush1.xpose.msra.mxu0 %v148
    %157 = vmatprep.subr.mxu0 0.0
    %158 = vmatpush1.xpose.msra.mxu0 %v145
    %159 = vmatprep.subr.mxu0 0.0
    %160 = vmatpush1.xpose.msra.mxu0 %v142
    %161 = vmatprep.subr.mxu0 0.0
    %162 = vmatpush1.xpose.msra.mxu0 %v139
    %163 = vmatprep.subr.mxu0 0.0
    %164 = vmatpush1.xpose.msra.mxu0 %v136
    %165 = vmatprep.subr.mxu0 0.0
    %166 = vmatpush1.xpose.msra.mxu0 %v133
    %167 = vmatprep.subr.mxu0 0.0
    %168 = vmatpush1.xpose.msra.mxu0 %v130
    %169 = vmatprep.subr.mxu0 0.0
    %170 = vmatpush1.xpose.msra.mxu0 %v127
    %171 = vmatprep.subr.mxu0 0.0
    %172 = vmatpush1.xpose.msra.mxu0 %v124
    %173 = vmatprep.subr.mxu0 0.0
    %174 = vmatpush1.xpose.msra.mxu0 %v121
    %175 = vmatprep.subr.mxu0 0.0
    %176 = vmatpush1.xpose.msra.mxu0 %v118
    %177 = vmatprep.subr.mxu0 0.0
    %178 = vmatpush1.xpose.msra.mxu0 %v115
    %179 = vmatprep.subr.mxu0 0.0
    %180 = vmatpush1.xpose.msra.mxu0 %v112
    %181 = vmatprep.subr.mxu0 0.0
    %182 = vmatpush1.xpose.msra.mxu0 %v109
    %183 = vmatprep.subr.mxu0 0.0
    %184 = vmatpush1.xpose.msra.mxu0 %v106
    %185 = vmatprep.subr.mxu0 0.0
    %186 = vmatpush2.xpose.msra.mxu0 0.0
    %187 = vmatprep.subr.mxu0 0.0
    %188 = vmatpush2.xpose.msra.mxu0 0.0
    %189 = vmatprep.subr.mxu0 0.0
    %190 = vmatpush2.xpose.msra.mxu0 0.0
    %191 = vmatprep.subr.mxu0 0.0
    %192 = vmatpush2.xpose.msra.mxu0 0.0
    %193 = vmatprep.subr.mxu0 0.0
    %194 = vmatpush2.xpose.msra.mxu0 0.0
    %195 = vmatprep.subr.mxu0 0.0
    %196 = vmatpush2.xpose.msra.mxu0 0.0
    %197 = vmatprep.subr.mxu0 0.0
    %198 = vmatpush2.xpose.msra.mxu0 0.0
    %199 = vmatprep.subr.mxu0 0.0
    %200 = vmatpush2.xpose.msra.mxu0 0.0
    %201 = vmatprep.subr.mxu0 0.0
    %202 = vmatpush2.xpose.msra.mxu0 0.0
    %203 = vmatprep.subr.mxu0 0.0
    %204 = vmatpush2.xpose.msra.mxu0 0.0
    %205 = vmatprep.subr.mxu0 0.0
    %206 = vmatpush2.xpose.msra.mxu0 0.0
    %207 = vmatprep.subr.mxu0 0.0
    %208 = vmatpush2.xpose.msra.mxu0 0.0
    %209 = vmatprep.subr.mxu0 0.0
    %210 = vmatpush2.xpose.msra.mxu0 0.0
    %211 = vmatprep.subr.mxu0 0.0
    %212 = vmatpush2.xpose.msra.mxu0 0.0
    %213 = vmatprep.subr.mxu0 0.0
    %214 = vmatpush2.xpose.msra.mxu0 0.0
    %215 = vmatprep.subr.mxu0 0.0
    %216 = vmatpush2.xpose.msra.mxu0 0.0
    %217 = vmatprep.mubr.f32.mxu0 0.0
    %218 = vmatmul.mubr.f32.gmra.mxu0 %v58
    %v219 = vpop.f32.mrf.mxu0
    %v220 = vadd.f32 %v54, %v219
    %v221 = vpop.f32.mrf.mxu0
    %222 = vmatprep.mubr.f32.mxu0 0.0
    %223 = vmatmul.mubr.f32.gmra.mxu0 %v61
    %v224 = vpop.f32.mrf.mxu0
    %v225 = vadd.f32 %v54, %v224
    %v226 = vpop.f32.mrf.mxu0
    %227 = vmatprep.mubr.f32.mxu0 0.0
    %228 = vmatmul.mubr.f32.gmra.mxu0 %v64
    %v229 = vpop.f32.mrf.mxu0
    %v230 = vadd.f32 %v54, %v229
    %v231 = vpop.f32.mrf.mxu0
    %232 = vmatprep.mubr.f32.mxu0 0.0
    %233 = vmatmul.mubr.f32.gmra.mxu0 %v67
    %v234 = vpop.f32.mrf.mxu0
    %v235 = vadd.f32 %v54, %v234
    %v236 = vpop.f32.mrf.mxu0
    %237 = vmatprep.mubr.f32.mxu0 0.0
    %238 = vmatmul.mubr.f32.gmra.mxu0 %v70
    %v239 = vpop.f32.mrf.mxu0
    %v240 = vadd.f32 %v54, %v239
    %v241 = vpop.f32.mrf.mxu0
    %242 = vmatprep.mubr.f32.mxu0 0.0
    %243 = vmatmul.mubr.f32.gmra.mxu0 %v73
    %v244 = vpop.f32.mrf.mxu0
    %v245 = vadd.f32 %v54, %v244
    %v246 = vpop.f32.mrf.mxu0
    %247 = vmatprep.mubr.f32.mxu0 0.0
    %248 = vmatmul.mubr.f32.gmra.mxu0 %v76
    %v249 = vpop.f32.mrf.mxu0
    %v250 = vadd.f32 %v54, %v249
    %v251 = vpop.f32.mrf.mxu0
    %252 = vmatprep.mubr.f32.mxu0 0.0
    %253 = vmatmul.mubr.f32.gmra.mxu0 %v79
    %v254 = vpop.f32.mrf.mxu0
    %v255 = vadd.f32 %v54, %v254
    %v256 = vpop.f32.mrf.mxu0
    %257 = vmatprep.mubr.f32.mxu0 0.0
    %258 = vmatmul.mubr.f32.gmra.mxu0 %v82
    %v259 = vpop.f32.mrf.mxu0
    %v260 = vadd.f32 %v54, %v259
    %v261 = vpop.f32.mrf.mxu0
    %262 = vmatprep.mubr.f32.mxu0 0.0
    %263 = vmatmul.mubr.f32.gmra.mxu0 %v85
    %v264 = vpop.f32.mrf.mxu0
    %v265 = vadd.f32 %v54, %v264
    %v266 = vpop.f32.mrf.mxu0
    %267 = vmatprep.mubr.f32.mxu0 0.0
    %268 = vmatmul.mubr.f32.gmra.mxu0 %v88
    %v269 = vpop.f32.mrf.mxu0
    %v270 = vadd.f32 %v54, %v269
    %v271 = vpop.f32.mrf.mxu0
    %272 = vmatprep.mubr.f32.mxu0 0.0
    %273 = vmatmul.mubr.f32.gmra.mxu0 %v91
    %v274 = vpop.f32.mrf.mxu0
    %v275 = vadd.f32 %v54, %v274
    %v276 = vpop.f32.mrf.mxu0
    %277 = vmatprep.mubr.f32.mxu0 0.0
    %278 = vmatmul.mubr.f32.gmra.mxu0 %v94
    %v279 = vpop.f32.mrf.mxu0
    %v280 = vadd.f32 %v54, %v279
    %v281 = vpop.f32.mrf.mxu0
    %282 = vmatprep.mubr.f32.mxu0 0.0
    %283 = vmatmul.mubr.f32.gmra.mxu0 %v97
    %v284 = vpop.f32.mrf.mxu0
    %v285 = vadd.f32 %v54, %v284
    %v286 = vpop.f32.mrf.mxu0
    %287 = vmatprep.mubr.f32.mxu0 0.0
    %288 = vmatmul.mubr.f32.gmra.mxu0 %v100
    %v289 = vpop.f32.mrf.mxu0
    %v290 = vadd.f32 %v54, %v289
    %v291 = vpop.f32.mrf.mxu0
    %292 = vmatprep.mubr.f32.mxu0 0.0
    %293 = vmatmul.mubr.f32.gmra.mxu0 %v103
    %v294 = vpop.f32.mrf.mxu0
    %v295 = vadd.f32 %v54, %v294
    %v296 = vpop.f32.mrf.mxu0
    %297 = vdwg.mxu0
    %298 = vmax.index.xlane.f32.xlu0 %v220
    %v299 = vpop.xlane.xlu0 %298
    %300 = vmax.index.xlane.f32.xlu0 %v225
    %v301 = vpop.xlane.xlu0 %300
    %302 = vmax.index.xlane.f32.xlu0 %v230
    %v303 = vpop.xlane.xlu0 %302
    %304 = vmax.index.xlane.f32.xlu0 %v235
    %v305 = vpop.xlane.xlu0 %304
    %306 = vmax.index.xlane.f32.xlu0 %v240
    %v307 = vpop.xlane.xlu0 %306
    %308 = vmax.index.xlane.f32.xlu0 %v245
    %v309 = vpop.xlane.xlu0 %308
    %310 = vmax.index.xlane.f32.xlu0 %v250
    %v311 = vpop.xlane.xlu0 %310
    %312 = vmax.index.xlane.f32.xlu0 %v255
    %v313 = vpop.xlane.xlu0 %312
    %314 = vmax.index.xlane.f32.xlu0 %v260
    %v315 = vpop.xlane.xlu0 %314
    %316 = vmax.index.xlane.f32.xlu0 %v265
    %v317 = vpop.xlane.xlu0 %316
    %318 = vmax.index.xlane.f32.xlu0 %v270
    %v319 = vpop.xlane.xlu0 %318
    %320 = vmax.index.xlane.f32.xlu0 %v275
    %v321 = vpop.xlane.xlu0 %320
    %322 = vmax.index.xlane.f32.xlu0 %v280
    %v323 = vpop.xlane.xlu0 %322
    %324 = vmax.index.xlane.f32.xlu0 %v285
    %v325 = vpop.xlane.xlu0 %324
    %326 = vmax.index.xlane.f32.xlu0 %v290
    %v327 = vpop.xlane.xlu0 %326
    %328 = vmax.index.xlane.f32.xlu0 %v295
    %v329 = vpop.xlane.xlu0 %328
    %v330 = vlaneseq
    %v331 = vand.u32 %v330, 127
    %v332 = vlaneseq
    %v333 = vshrl.u32 %v332, 7
    %v334 = vsub.s32 %v331, %v333
    %v335 = vrot.slane %v299, %v334
    %v336 = vadd.s32 %v331, 4294967288
    %v337 = vlaneseq
    %v338 = vshrl.u32 %v337, 7
    %v339 = vsub.s32 %v336, %v338
    %v340 = vrot.slane %v301, %v339
    %vm341 = vcmask 130112
    %v342 = vsel %vm341, %v340, %v335
    %v343 = vadd.s32 %v331, 4294967280
    %v344 = vlaneseq
    %v345 = vshrl.u32 %v344, 7
    %v346 = vsub.s32 %v343, %v345
    %v347 = vrot.slane %v303, %v346
    %vm348 = vcmask 195712
    %v349 = vsel %vm348, %v347, %v342
    %v350 = vadd.s32 %v331, 4294967272
    %v351 = vlaneseq
    %v352 = vshrl.u32 %v351, 7
    %v353 = vsub.s32 %v350, %v352
    %v354 = vrot.slane %v305, %v353
    %vm355 = vcmask 261312
    %v356 = vsel %vm355, %v354, %v349
    %v357 = vadd.s32 %v331, 4294967264
    %v358 = vlaneseq
    %v359 = vshrl.u32 %v358, 7
    %v360 = vsub.s32 %v357, %v359
    %v361 = vrot.slane %v307, %v360
    %vm362 = vcmask 326912
    %v363 = vsel %vm362, %v361, %v356
    %v364 = vadd.s32 %v331, 4294967256
    %v365 = vlaneseq
    %v366 = vshrl.u32 %v365, 7
    %v367 = vsub.s32 %v364, %v366
    %v368 = vrot.slane %v309, %v367
    %vm369 = vcmask 392512
    %v370 = vsel %vm369, %v368, %v363
    %v371 = vadd.s32 %v331, 4294967248
    %v372 = vlaneseq
    %v373 = vshrl.u32 %v372, 7
    %v374 = vsub.s32 %v371, %v373
    %v375 = vrot.slane %v311, %v374
    %vm376 = vcmask 458112
    %v377 = vsel %vm376, %v375, %v370
    %v378 = vadd.s32 %v331, 4294967240
    %v379 = vlaneseq
    %v380 = vshrl.u32 %v379, 7
    %v381 = vsub.s32 %v378, %v380
    %v382 = vrot.slane %v313, %v381
    %vm383 = vcmask 523712
    %v384 = vsel %vm383, %v382, %v377
    %v385 = vadd.s32 %v331, 4294967232
    %v386 = vlaneseq
    %v387 = vshrl.u32 %v386, 7
    %v388 = vsub.s32 %v385, %v387
    %v389 = vrot.slane %v315, %v388
    %vm390 = vcmask 589312
    %v391 = vsel %vm390, %v389, %v384
    %v392 = vadd.s32 %v331, 4294967224
    %v393 = vlaneseq
    %v394 = vshrl.u32 %v393, 7
    %v395 = vsub.s32 %v392, %v394
    %v396 = vrot.slane %v317, %v395
    %vm397 = vcmask 654912
    %v398 = vsel %vm397, %v396, %v391
    %v399 = vadd.s32 %v331, 4294967216
    %v400 = vlaneseq
    %v401 = vshrl.u32 %v400, 7
    %v402 = vsub.s32 %v399, %v401
    %v403 = vrot.slane %v319, %v402
    %vm404 = vcmask 720512
    %v405 = vsel %vm404, %v403, %v398
    %v406 = vadd.s32 %v331, 4294967208
    %v407 = vlaneseq
    %v408 = vshrl.u32 %v407, 7
    %v409 = vsub.s32 %v406, %v408
    %v410 = vrot.slane %v321, %v409
    %vm411 = vcmask 786112
    %v412 = vsel %vm411, %v410, %v405
    %v413 = vadd.s32 %v331, 4294967200
    %v414 = vlaneseq
    %v415 = vshrl.u32 %v414, 7
    %v416 = vsub.s32 %v413, %v415
    %v417 = vrot.slane %v323, %v416
    %vm418 = vcmask 851712
    %v419 = vsel %vm418, %v417, %v412
    %v420 = vadd.s32 %v331, 4294967192
    %v421 = vlaneseq
    %v422 = vshrl.u32 %v421, 7
    %v423 = vsub.s32 %v420, %v422
    %v424 = vrot.slane %v325, %v423
    %vm425 = vcmask 917312
    %v426 = vsel %vm425, %v424, %v419
    %v427 = vadd.s32 %v331, 4294967184
    %v428 = vlaneseq
    %v429 = vshrl.u32 %v428, 7
    %v430 = vsub.s32 %v427, %v429
    %v431 = vrot.slane %v327, %v430
    %vm432 = vcmask 982912
    %v433 = vsel %vm432, %v431, %v426
    %v434 = vadd.s32 %v331, 4294967176
    %v435 = vlaneseq
    %v436 = vshrl.u32 %v435, 7
    %v437 = vsub.s32 %v434, %v436
    %v438 = vrot.slane %v329, %v437
    %vm439 = vcmask 1048512
    %v440 = vsel %vm439, %v438, %v433
    %441 = vst [vmem:[#allocation2] sm:$0x1] %v440
    %vm442 = vcmp.eq.s32.totalorder %v331, %v299
    %vm443 = vcmp.eq.s32.totalorder %v331, %v301
    %vm444 = vcmp.eq.s32.totalorder %v331, %v303
    %vm445 = vcmp.eq.s32.totalorder %v331, %v305
    %vm446 = vcmp.eq.s32.totalorder %v331, %v307
    %vm447 = vcmp.eq.s32.totalorder %v331, %v309
    %vm448 = vcmp.eq.s32.totalorder %v331, %v311
    %vm449 = vcmp.eq.s32.totalorder %v331, %v313
    %vm450 = vcmp.eq.s32.totalorder %v331, %v315
    %vm451 = vcmp.eq.s32.totalorder %v331, %v317
    %vm452 = vcmp.eq.s32.totalorder %v331, %v319
    %vm453 = vcmp.eq.s32.totalorder %v331, %v321
    %vm454 = vcmp.eq.s32.totalorder %v331, %v323
    %vm455 = vcmp.eq.s32.totalorder %v331, %v325
    %vm456 = vcmp.eq.s32.totalorder %v331, %v327
    %vm457 = vcmp.eq.s32.totalorder %v331, %v329
    %v458 = vsel %vm442, 1, 0
    %v459 = vsel %vm443, 1, 0
    %v460 = vsel %vm444, 1, 0
    %v461 = vsel %vm445, 1, 0
    %v462 = vsel %vm446, 1, 0
    %v463 = vsel %vm447, 1, 0
    %v464 = vsel %vm448, 1, 0
    %v465 = vsel %vm449, 1, 0
    %v466 = vsel %vm450, 1, 0
    %v467 = vsel %vm451, 1, 0
    %v468 = vsel %vm452, 1, 0
    %v469 = vsel %vm453, 1, 0
    %v470 = vsel %vm454, 1, 0
    %v471 = vsel %vm455, 1, 0
    %v472 = vsel %vm456, 1, 0
    %v473 = vsel %vm457, 1, 0
    %v474 = vcvt.s32.f32 %v458
    %v475 = vcvt.s32.f32 %v459
    %v476 = vcvt.s32.f32 %v460
    %v477 = vcvt.s32.f32 %v461
    %v478 = vcvt.s32.f32 %v462
    %v479 = vcvt.s32.f32 %v463
    %v480 = vcvt.s32.f32 %v464
    %v481 = vcvt.s32.f32 %v465
    %v482 = vcvt.s32.f32 %v466
    %v483 = vcvt.s32.f32 %v467
    %v484 = vcvt.s32.f32 %v468
    %v485 = vcvt.s32.f32 %v469
    %v486 = vcvt.s32.f32 %v470
    %v487 = vcvt.s32.f32 %v471
    %v488 = vcvt.s32.f32 %v472
    %v489 = vcvt.s32.f32 %v473
    %490 = vmatprep.subr.mxu0 0.0
    %491 = vmatpush1.msra.mxu0 %v48
    %492 = vmatprep.subr.mxu0 0.0
    %493 = vmatpush1.msra.mxu0 %v47
    %494 = vmatprep.subr.mxu0 0.0
    %495 = vmatpush1.msra.mxu0 %v46
    %496 = vmatprep.subr.mxu0 0.0
    %497 = vmatpush1.msra.mxu0 %v45
    %498 = vmatprep.subr.mxu0 0.0
    %499 = vmatpush1.msra.mxu0 %v44
    %500 = vmatprep.subr.mxu0 0.0
    %501 = vmatpush1.msra.mxu0 %v43
    %502 = vmatprep.subr.mxu0 0.0
    %503 = vmatpush1.msra.mxu0 %v42
    %504 = vmatprep.subr.mxu0 0.0
    %505 = vmatpush1.msra.mxu0 %v41
    %506 = vmatprep.subr.mxu0 0.0
    %507 = vmatpush1.msra.mxu0 %v40
    %508 = vmatprep.subr.mxu0 0.0
    %509 = vmatpush1.msra.mxu0 %v39
    %510 = vmatprep.subr.mxu0 0.0
    %511 = vmatpush1.msra.mxu0 %v38
    %512 = vmatprep.subr.mxu0 0.0
    %513 = vmatpush1.msra.mxu0 %v37
    %514 = vmatprep.subr.mxu0 0.0
    %515 = vmatpush1.msra.mxu0 %v36
    %516 = vmatprep.subr.mxu0 0.0
    %517 = vmatpush1.msra.mxu0 %v35
    %518 = vmatprep.subr.mxu0 0.0
    %519 = vmatpush1.msra.mxu0 %v34
    %520 = vmatprep.subr.mxu0 0.0
    %521 = vmatpush1.msra.mxu0 %v33
    %522 = vmatprep.subr.mxu0 0.0
    %523 = vmatpush2.msra.mxu0 0.0
    %524 = vmatprep.subr.mxu0 0.0
    %525 = vmatpush2.msra.mxu0 0.0
    %526 = vmatprep.subr.mxu0 0.0
    %527 = vmatpush2.msra.mxu0 0.0
    %528 = vmatprep.subr.mxu0 0.0
    %529 = vmatpush2.msra.mxu0 0.0
    %530 = vmatprep.subr.mxu0 0.0
    %531 = vmatpush2.msra.mxu0 0.0
    %532 = vmatprep.subr.mxu0 0.0
    %533 = vmatpush2.msra.mxu0 0.0
    %534 = vmatprep.subr.mxu0 0.0
    %535 = vmatpush2.msra.mxu0 0.0
    %536 = vmatprep.subr.mxu0 0.0
    %537 = vmatpush2.msra.mxu0 0.0
    %538 = vmatprep.subr.mxu0 0.0
    %539 = vmatpush2.msra.mxu0 0.0
    %540 = vmatprep.subr.mxu0 0.0
    %541 = vmatpush2.msra.mxu0 0.0
    %542 = vmatprep.subr.mxu0 0.0
    %543 = vmatpush2.msra.mxu0 0.0
    %544 = vmatprep.subr.mxu0 0.0
    %545 = vmatpush2.msra.mxu0 0.0
    %546 = vmatprep.subr.mxu0 0.0
    %547 = vmatpush2.msra.mxu0 0.0
    %548 = vmatprep.subr.mxu0 0.0
    %549 = vmatpush2.msra.mxu0 0.0
    %550 = vmatprep.subr.mxu0 0.0
    %551 = vmatpush2.msra.mxu0 0.0
    %552 = vmatprep.subr.mxu0 0.0
    %553 = vmatpush2.msra.mxu0 0.0
    %554 = vmatprep.mubr.f32.mxu0 0.0
    %555 = vmatmul.mubr.f32.gmra.mxu0 %v474
    %v556 = vpop.f32.mrf.mxu0
    %v557 = vadd.f32 0.0, %v556
    %v558 = vpop.f32.mrf.mxu0
    %559 = vmatprep.mubr.f32.mxu0 0.0
    %560 = vmatmul.mubr.f32.gmra.mxu0 %v475
    %v561 = vpop.f32.mrf.mxu0
    %v562 = vadd.f32 0.0, %v561
    %v563 = vpop.f32.mrf.mxu0
    %564 = vmatprep.mubr.f32.mxu0 0.0
    %565 = vmatmul.mubr.f32.gmra.mxu0 %v476
    %v566 = vpop.f32.mrf.mxu0
    %v567 = vadd.f32 0.0, %v566
    %v568 = vpop.f32.mrf.mxu0
    %569 = vmatprep.mubr.f32.mxu0 0.0
    %570 = vmatmul.mubr.f32.gmra.mxu0 %v477
    %v571 = vpop.f32.mrf.mxu0
    %v572 = vadd.f32 0.0, %v571
    %v573 = vpop.f32.mrf.mxu0
    %574 = vmatprep.mubr.f32.mxu0 0.0
    %575 = vmatmul.mubr.f32.gmra.mxu0 %v478
    %v576 = vpop.f32.mrf.mxu0
    %v577 = vadd.f32 0.0, %v576
    %v578 = vpop.f32.mrf.mxu0
    %579 = vmatprep.mubr.f32.mxu0 0.0
    %580 = vmatmul.mubr.f32.gmra.mxu0 %v479
    %v581 = vpop.f32.mrf.mxu0
    %v582 = vadd.f32 0.0, %v581
    %v583 = vpop.f32.mrf.mxu0
    %584 = vmatprep.mubr.f32.mxu0 0.0
    %585 = vmatmul.mubr.f32.gmra.mxu0 %v480
    %v586 = vpop.f32.mrf.mxu0
    %v587 = vadd.f32 0.0, %v586
    %v588 = vpop.f32.mrf.mxu0
    %589 = vmatprep.mubr.f32.mxu0 0.0
    %590 = vmatmul.mubr.f32.gmra.mxu0 %v481
    %v591 = vpop.f32.mrf.mxu0
    %v592 = vadd.f32 0.0, %v591
    %v593 = vpop.f32.mrf.mxu0
    %594 = vmatprep.mubr.f32.mxu0 0.0
    %595 = vmatmul.mubr.f32.gmra.mxu0 %v482
    %v596 = vpop.f32.mrf.mxu0
    %v597 = vadd.f32 0.0, %v596
    %v598 = vpop.f32.mrf.mxu0
    %599 = vmatprep.mubr.f32.mxu0 0.0
    %600 = vmatmul.mubr.f32.gmra.mxu0 %v483
    %v601 = vpop.f32.mrf.mxu0
    %v602 = vadd.f32 0.0, %v601
    %v603 = vpop.f32.mrf.mxu0
    %604 = vmatprep.mubr.f32.mxu0 0.0
    %605 = vmatmul.mubr.f32.gmra.mxu0 %v484
    %v606 = vpop.f32.mrf.mxu0
    %v607 = vadd.f32 0.0, %v606
    %v608 = vpop.f32.mrf.mxu0
    %609 = vmatprep.mubr.f32.mxu0 0.0
    %610 = vmatmul.mubr.f32.gmra.mxu0 %v485
    %v611 = vpop.f32.mrf.mxu0
    %v612 = vadd.f32 0.0, %v611
    %v613 = vpop.f32.mrf.mxu0
    %614 = vmatprep.mubr.f32.mxu0 0.0
    %615 = vmatmul.mubr.f32.gmra.mxu0 %v486
    %v616 = vpop.f32.mrf.mxu0
    %v617 = vadd.f32 0.0, %v616
    %v618 = vpop.f32.mrf.mxu0
    %619 = vmatprep.mubr.f32.mxu0 0.0
    %620 = vmatmul.mubr.f32.gmra.mxu0 %v487
    %v621 = vpop.f32.mrf.mxu0
    %v622 = vadd.f32 0.0, %v621
    %v623 = vpop.f32.mrf.mxu0
    %624 = vmatprep.mubr.f32.mxu0 0.0
    %625 = vmatmul.mubr.f32.gmra.mxu0 %v488
    %v626 = vpop.f32.mrf.mxu0
    %v627 = vadd.f32 0.0, %v626
    %v628 = vpop.f32.mrf.mxu0
    %629 = vmatprep.mubr.f32.mxu0 0.0
    %630 = vmatmul.mubr.f32.gmra.mxu0 %v489
    %v631 = vpop.f32.mrf.mxu0
    %v632 = vadd.f32 0.0, %v631
    %v633 = vpop.f32.mrf.mxu0
    %634 = vdwg.mxu0
    %635 = vst.msk [vmem:[%s3] sm:$0xff] %vm56, %v557
    %636 = vst.msk [vmem:[%s3 + $0x8] sm:$0xff] %vm56, %v562
    %637 = vst.msk [vmem:[%s3 + $0x10] sm:$0xff] %vm56, %v567
    %638 = vst.msk [vmem:[%s3 + $0x18] sm:$0xff] %vm56, %v572
    %639 = vst.msk [vmem:[%s3 + $0x20] sm:$0xff] %vm56, %v577
    %640 = vst.msk [vmem:[%s3 + $0x28] sm:$0xff] %vm56, %v582
    %641 = vst.msk [vmem:[%s3 + $0x30] sm:$0xff] %vm56, %v587
    %642 = vst.msk [vmem:[%s3 + $0x38] sm:$0xff] %vm56, %v592
    %643 = vst.msk [vmem:[%s3 + $0x40] sm:$0xff] %vm56, %v597
    %644 = vst.msk [vmem:[%s3 + $0x48] sm:$0xff] %vm56, %v602
    %645 = vst.msk [vmem:[%s3 + $0x50] sm:$0xff] %vm56, %v607
    %646 = vst.msk [vmem:[%s3 + $0x58] sm:$0xff] %vm56, %v612
    %647 = vst.msk [vmem:[%s3 + $0x60] sm:$0xff] %vm56, %v617
    %648 = vst.msk [vmem:[%s3 + $0x68] sm:$0xff] %vm56, %v622
    %649 = vst.msk [vmem:[%s3 + $0x70] sm:$0xff] %vm56, %v627
    %650 = vst.msk [vmem:[%s3 + $0x78] sm:$0xff] %vm56, %v632
    // Predicated region
    $region14: #{tpu_custom_call.1} parent=1 // pred_check
      _
    $region15: #{tpu_custom_call.1} parent=1 // pred_check_branch
      %652 = sbr.rel (0) target = $region17
    $region16: #{tpu_custom_call.1} parent=1 // pred_region
      _
    $region17: #{tpu_custom_call.1} parent=1 // pred_fallthru
      _
    // Predicated region
    $region18: #{tpu_custom_call.1} parent=1 // pred_check
      _
    $region19: #{tpu_custom_call.1} parent=1 // pred_check_branch
      %654 = sbr.rel (0) target = $region21
    $region20: #{tpu_custom_call.1} parent=1 // pred_region
      %s656 = ssub.s32 16, 16
      %657 = vsyncadd [#allocation3], %s656
      %s659 = sshll.u32 [#allocation2], 4
      %s660 = int_to_ptr.vmem [resolvable:$true] %s659
      %662 = dma.vmem_to_hbm [thread:$0]  %s660, 16, %s4, [#allocation3]
    $region21: #{tpu_custom_call.1} parent=1 // pred_fallthru
      _
    // Predicated region
    $region22: #{tpu_custom_call.1} parent=1 // pred_check
      _
    $region23: #{tpu_custom_call.1} parent=1 // pred_check_branch
      %664 = sbr.rel (0) target = $region25
    $region24: #{tpu_custom_call.1} parent=1 // pred_region
      _
    $region25: #{tpu_custom_call.1} parent=1 // pred_fallthru
      _
    // Predicated region
    $region26: #{tpu_custom_call.1} parent=1 // pred_check
      _
    $region27: #{tpu_custom_call.1} parent=1 // pred_check_branch
      %666 = sbr.rel (0) target = $region29
    $region28: #{tpu_custom_call.1} parent=1 // pred_region
      %667 = dma.done [#allocation3], 16
    $region29: #{tpu_custom_call.1} parent=1 // pred_fallthru
      _
    %668 = vsyncpa [#allocation3], 1

// kernel: tpu_custom_call.1
$region0: #{tpu_custom_call.1}
  #allocation0 [shape = 'u32[]', space=smem, size = 0x4, offset = 0x4, fixed_abs, tag = 'smem constant byte address 0x4 - core index']
  #allocation1 [shape = 'u32[144,128]{1,0:T(1,128)}', space=vmem, size = 0x12000, scoped, tag = 'internal scratch']
  %s0 = inlined_call_operand.vmem [shape: f32[128,32], index: 0, kind: input, shape index: {}]
  %s1 = inlined_call_operand.vmem [shape: f32[128,32], index: 1, kind: input, shape index: {}]
  %s2 = inlined_call_operand.vmem [shape: f32[1,128], index: 2, kind: input, shape index: {}]
  %s3 = inlined_call_operand.vmem [shape: f32[128,32], index: 3, kind: output, shape index: {0}]
  %s4 = inlined_call_operand.hbm [shape: s32[1,128], index: 4, kind: output, shape index: {1}]
  %5 = xla_tuple %s3, %s4
  %s6 = sld [smem:[#allocation0]]
  $region30: #{tpu_custom_call.1} parent=0
    _
  %s8 = ssub.s32 1, %s6
  %s9 = scalar_select 0, %s8, %s6
  $region1: #{tpu_custom_call.1} parent=0
    #allocation2 [shape = 'u8[512]{0}', space=vmem, size = 0x400, scoped, tag = 'output window, operand 1, single buffered']
    #allocation3 [shape = 's32[1]{0}', space=sflag, size = 0x4, scoped, tag = 'scoped memory for tpu_custom_call.1']
    %10 = vsyncpa [#allocation3], 0
    // Predicated region
    $region2: #{tpu_custom_call.1} parent=1 // pred_check
      _
    $region3: #{tpu_custom_call.1} parent=1 // pred_check_branch
      %12 = sbr.rel (0) target = $region5
    $region4: #{tpu_custom_call.1} parent=1 // pred_region
      _
    $region5: #{tpu_custom_call.1} parent=1 // pred_fallthru
      _
    // Predicated region
    $region6: #{tpu_custom_call.1} parent=1 // pred_check
      _
    $region7: #{tpu_custom_call.1} parent=1 // pred_check_branch
      %14 = sbr.rel (0) target = $region9
    $region8: #{tpu_custom_call.1} parent=1 // pred_region
      _
    $region9: #{tpu_custom_call.1} parent=1 // pred_fallthru
      _
    // Predicated region
    $region10: #{tpu_custom_call.1} parent=1 // pred_check
      _
    $region11: #{tpu_custom_call.1} parent=1 // pred_check_branch
      %16 = sbr.rel (0) target = $region13
    $region12: #{tpu_custom_call.1} parent=1 // pred_region
      _
    $region13: #{tpu_custom_call.1} parent=1 // pred_fallthru
      _
    %v17 = vld [vmem:[%s0] sm:$0xff]
    %v18 = vld [vmem:[%s0 + $0x8] sm:$0xff]
    %v19 = vld [vmem:[%s0 + $0x10] sm:$0xff]
    %v20 = vld [vmem:[%s0 + $0x18] sm:$0xff]
    %v21 = vld [vmem:[%s0 + $0x20] sm:$0xff]
    %v22 = vld [vmem:[%s0 + $0x28] sm:$0xff]
    %v23 = vld [vmem:[%s0 + $0x30] sm:$0xff]
    %v24 = vld [vmem:[%s0 + $0x38] sm:$0xff]
    %v25 = vld [vmem:[%s0 + $0x40] sm:$0xff]
    %v26 = vld [vmem:[%s0 + $0x48] sm:$0xff]
    %v27 = vld [vmem:[%s0 + $0x50] sm:$0xff]
    %v28 = vld [vmem:[%s0 + $0x58] sm:$0xff]
    %v29 = vld [vmem:[%s0 + $0x60] sm:$0xff]
    %v30 = vld [vmem:[%s0 + $0x68] sm:$0xff]
    %v31 = vld [vmem:[%s0 + $0x70] sm:$0xff]
    %v32 = vld [vmem:[%s0 + $0x78] sm:$0xff]
    %v33 = vld [vmem:[%s1] sm:$0xff]
    %v34 = vld [vmem:[%s1 + $0x8] sm:$0xff]
    %v35 = vld [vmem:[%s1 + $0x10] sm:$0xff]
    %v36 = vld [vmem:[%s1 + $0x18] sm:$0xff]
    %v37 = vld [vmem:[%s1 + $0x20] sm:$0xff]
    %v38 = vld [vmem:[%s1 + $0x28] sm:$0xff]
    %v39 = vld [vmem:[%s1 + $0x30] sm:$0xff]
    %v40 = vld [vmem:[%s1 + $0x38] sm:$0xff]
    %v41 = vld [vmem:[%s1 + $0x40] sm:$0xff]
    %v42 = vld [vmem:[%s1 + $0x48] sm:$0xff]
    %v43 = vld [vmem:[%s1 + $0x50] sm:$0xff]
    %v44 = vld [vmem:[%s1 + $0x58] sm:$0xff]
    %v45 = vld [vmem:[%s1 + $0x60] sm:$0xff]
    %v46 = vld [vmem:[%s1 + $0x68] sm:$0xff]
    %v47 = vld [vmem:[%s1 + $0x70] sm:$0xff]
    %v48 = vld [vmem:[%s1 + $0x78] sm:$0xff]
    %v49 = vld [vmem:[%s2] sm:$0x1]
    %v51 = vlaneseq
    %v52 = vshrl.u32 %v51, 7
    %v53 = vsub.s32 0, %v52
    %v54 = vrot.slane %v49, %v53
    %vm56 = vcmask 261120
    %v58 = vsel %vm56, %v17, 0
    %v61 = vsel %vm56, %v18, 0
    %v64 = vsel %vm56, %v19, 0
    %v67 = vsel %vm56, %v20, 0
    %v70 = vsel %vm56, %v21, 0
    %v73 = vsel %vm56, %v22, 0
    %v76 = vsel %vm56, %v23, 0
    %v79 = vsel %vm56, %v24, 0
    %v82 = vsel %vm56, %v25, 0
    %v85 = vsel %vm56, %v26, 0
    %v88 = vsel %vm56, %v27, 0
    %v91 = vsel %vm56, %v28, 0
    %v94 = vsel %vm56, %v29, 0
    %v97 = vsel %vm56, %v30, 0
    %v100 = vsel %vm56, %v31, 0
    %v103 = vsel %vm56, %v32, 0
    %v106 = vsel %vm56, %v33, 0
    %v109 = vsel %vm56, %v34, 0
    %v112 = vsel %vm56, %v35, 0
    %v115 = vsel %vm56, %v36, 0
    %v118 = vsel %vm56, %v37, 0
    %v121 = vsel %vm56, %v38, 0
    %v124 = vsel %vm56, %v39, 0
    %v127 = vsel %vm56, %v40, 0
    %v130 = vsel %vm56, %v41, 0
    %v133 = vsel %vm56, %v42, 0
    %v136 = vsel %vm56, %v43, 0
    %v139 = vsel %vm56, %v44, 0
    %v142 = vsel %vm56, %v45, 0
    %v145 = vsel %vm56, %v46, 0
    %v148 = vsel %vm56, %v47, 0
    %v151 = vsel %vm56, %v48, 0
    %153 = vmatprep.subr.mxu0 0.0
    %154 = vmatpush1.xpose.msra.mxu0 %v151
    %155 = vmatprep.subr.mxu0 0.0
    %156 = vmatpush1.xpose.msra.mxu0 %v148
    %157 = vmatprep.subr.mxu0 0.0
    %158 = vmatpush1.xpose.msra.mxu0 %v145
    %159 = vmatprep.subr.mxu0 0.0
    %160 = vmatpush1.xpose.msra.mxu0 %v142
    %161 = vmatprep.subr.mxu0 0.0
    %162 = vmatpush1.xpose.msra.mxu0 %v139
    %163 = vmatprep.subr.mxu0 0.0
    %164 = vmatpush1.xpose.msra.mxu0 %v136
    %165 = vmatprep.subr.mxu0 0.0
    %166 = vmatpush1.xpose.msra.mxu0 %v133
    %167 = vmatprep.subr.mxu0 0.0
    %168 = vmatpush1.xpose.msra.mxu0 %v130
    %169 = vmatprep.subr.mxu0 0.0
    %170 = vmatpush1.xpose.msra.mxu0 %v127
    %171 = vmatprep.subr.mxu0 0.0
    %172 = vmatpush1.xpose.msra.mxu0 %v124
    %173 = vmatprep.subr.mxu0 0.0
    %174 = vmatpush1.xpose.msra.mxu0 %v121
    %175 = vmatprep.subr.mxu0 0.0
    %176 = vmatpush1.xpose.msra.mxu0 %v118
    %177 = vmatprep.subr.mxu0 0.0
    %178 = vmatpush1.xpose.msra.mxu0 %v115
    %179 = vmatprep.subr.mxu0 0.0
    %180 = vmatpush1.xpose.msra.mxu0 %v112
    %181 = vmatprep.subr.mxu0 0.0
    %182 = vmatpush1.xpose.msra.mxu0 %v109
    %183 = vmatprep.subr.mxu0 0.0
    %184 = vmatpush1.xpose.msra.mxu0 %v106
    %185 = vmatprep.subr.mxu0 0.0
    %186 = vmatpush2.xpose.msra.mxu0 0.0
    %187 = vmatprep.subr.mxu0 0.0
    %188 = vmatpush2.xpose.msra.mxu0 0.0
    %189 = vmatprep.subr.mxu0 0.0
    %190 = vmatpush2.xpose.msra.mxu0 0.0
    %191 = vmatprep.subr.mxu0 0.0
    %192 = vmatpush2.xpose.msra.mxu0 0.0
    %193 = vmatprep.subr.mxu0 0.0
    %194 = vmatpush2.xpose.msra.mxu0 0.0
    %195 = vmatprep.subr.mxu0 0.0
    %196 = vmatpush2.xpose.msra.mxu0 0.0
    %197 = vmatprep.subr.mxu0 0.0
    %198 = vmatpush2.xpose.msra.mxu0 0.0
    %199 = vmatprep.subr.mxu0 0.0
    %200 = vmatpush2.xpose.msra.mxu0 0.0
    %201 = vmatprep.subr.mxu0 0.0
    %202 = vmatpush2.xpose.msra.mxu0 0.0
    %203 = vmatprep.subr.mxu0 0.0
    %204 = vmatpush2.xpose.msra.mxu0 0.0
    %205 = vmatprep.subr.mxu0 0.0
    %206 = vmatpush2.xpose.msra.mxu0 0.0
    %207 = vmatprep.subr.mxu0 0.0
    %208 = vmatpush2.xpose.msra.mxu0 0.0
    %209 = vmatprep.subr.mxu0 0.0
    %210 = vmatpush2.xpose.msra.mxu0 0.0
    %211 = vmatprep.subr.mxu0 0.0
    %212 = vmatpush2.xpose.msra.mxu0 0.0
    %213 = vmatprep.subr.mxu0 0.0
    %214 = vmatpush2.xpose.msra.mxu0 0.0
    %215 = vmatprep.subr.mxu0 0.0
    %216 = vmatpush2.xpose.msra.mxu0 0.0
    %217 = vmatprep.mubr.f32.mxu0 0.0
    %218 = vmatmul.mubr.f32.gmra.mxu0 %v58
    %v219 = vpop.f32.mrf.mxu0
    %v220 = vadd.f32 %v54, %v219
    %v221 = vpop.f32.mrf.mxu0
    %222 = vmatprep.mubr.f32.mxu0 0.0
    %223 = vmatmul.mubr.f32.gmra.mxu0 %v61
    %v224 = vpop.f32.mrf.mxu0
    %v225 = vadd.f32 %v54, %v224
    %v226 = vpop.f32.mrf.mxu0
    %227 = vmatprep.mubr.f32.mxu0 0.0
    %228 = vmatmul.mubr.f32.gmra.mxu0 %v64
    %v229 = vpop.f32.mrf.mxu0
    %v230 = vadd.f32 %v54, %v229
    %v231 = vpop.f32.mrf.mxu0
    %232 = vmatprep.mubr.f32.mxu0 0.0
    %233 = vmatmul.mubr.f32.gmra.mxu0 %v67
    %v234 = vpop.f32.mrf.mxu0
    %v235 = vadd.f32 %v54, %v234
    %v236 = vpop.f32.mrf.mxu0
    %237 = vmatprep.mubr.f32.mxu0 0.0
    %238 = vmatmul.mubr.f32.gmra.mxu0 %v70
    %v239 = vpop.f32.mrf.mxu0
    %v240 = vadd.f32 %v54, %v239
    %v241 = vpop.f32.mrf.mxu0
    %242 = vmatprep.mubr.f32.mxu0 0.0
    %243 = vmatmul.mubr.f32.gmra.mxu0 %v73
    %v244 = vpop.f32.mrf.mxu0
    %v245 = vadd.f32 %v54, %v244
    %v246 = vpop.f32.mrf.mxu0
    %247 = vmatprep.mubr.f32.mxu0 0.0
    %248 = vmatmul.mubr.f32.gmra.mxu0 %v76
    %v249 = vpop.f32.mrf.mxu0
    %v250 = vadd.f32 %v54, %v249
    %v251 = vpop.f32.mrf.mxu0
    %252 = vmatprep.mubr.f32.mxu0 0.0
    %253 = vmatmul.mubr.f32.gmra.mxu0 %v79
    %v254 = vpop.f32.mrf.mxu0
    %v255 = vadd.f32 %v54, %v254
    %v256 = vpop.f32.mrf.mxu0
    %257 = vmatprep.mubr.f32.mxu0 0.0
    %258 = vmatmul.mubr.f32.gmra.mxu0 %v82
    %v259 = vpop.f32.mrf.mxu0
    %v260 = vadd.f32 %v54, %v259
    %v261 = vpop.f32.mrf.mxu0
    %262 = vmatprep.mubr.f32.mxu0 0.0
    %263 = vmatmul.mubr.f32.gmra.mxu0 %v85
    %v264 = vpop.f32.mrf.mxu0
    %v265 = vadd.f32 %v54, %v264
    %v266 = vpop.f32.mrf.mxu0
    %267 = vmatprep.mubr.f32.mxu0 0.0
    %268 = vmatmul.mubr.f32.gmra.mxu0 %v88
    %v269 = vpop.f32.mrf.mxu0
    %v270 = vadd.f32 %v54, %v269
    %v271 = vpop.f32.mrf.mxu0
    %272 = vmatprep.mubr.f32.mxu0 0.0
    %273 = vmatmul.mubr.f32.gmra.mxu0 %v91
    %v274 = vpop.f32.mrf.mxu0
    %v275 = vadd.f32 %v54, %v274
    %v276 = vpop.f32.mrf.mxu0
    %277 = vmatprep.mubr.f32.mxu0 0.0
    %278 = vmatmul.mubr.f32.gmra.mxu0 %v94
    %v279 = vpop.f32.mrf.mxu0
    %v280 = vadd.f32 %v54, %v279
    %v281 = vpop.f32.mrf.mxu0
    %282 = vmatprep.mubr.f32.mxu0 0.0
    %283 = vmatmul.mubr.f32.gmra.mxu0 %v97
    %v284 = vpop.f32.mrf.mxu0
    %v285 = vadd.f32 %v54, %v284
    %v286 = vpop.f32.mrf.mxu0
    %287 = vmatprep.mubr.f32.mxu0 0.0
    %288 = vmatmul.mubr.f32.gmra.mxu0 %v100
    %v289 = vpop.f32.mrf.mxu0
    %v290 = vadd.f32 %v54, %v289
    %v291 = vpop.f32.mrf.mxu0
    %292 = vmatprep.mubr.f32.mxu0 0.0
    %293 = vmatmul.mubr.f32.gmra.mxu0 %v103
    %v294 = vpop.f32.mrf.mxu0
    %v295 = vadd.f32 %v54, %v294
    %v296 = vpop.f32.mrf.mxu0
    %297 = vdwg.mxu0
    %298 = vmax.index.xlane.f32.xlu0 %v220
    %v299 = vpop.xlane.xlu0 %298
    %300 = vmax.index.xlane.f32.xlu0 %v225
    %v301 = vpop.xlane.xlu0 %300
    %302 = vmax.index.xlane.f32.xlu0 %v230
    %v303 = vpop.xlane.xlu0 %302
    %304 = vmax.index.xlane.f32.xlu0 %v235
    %v305 = vpop.xlane.xlu0 %304
    %306 = vmax.index.xlane.f32.xlu0 %v240
    %v307 = vpop.xlane.xlu0 %306
    %308 = vmax.index.xlane.f32.xlu0 %v245
    %v309 = vpop.xlane.xlu0 %308
    %310 = vmax.index.xlane.f32.xlu0 %v250
    %v311 = vpop.xlane.xlu0 %310
    %312 = vmax.index.xlane.f32.xlu0 %v255
    %v313 = vpop.xlane.xlu0 %312
    %314 = vmax.index.xlane.f32.xlu0 %v260
    %v315 = vpop.xlane.xlu0 %314
    %316 = vmax.index.xlane.f32.xlu0 %v265
    %v317 = vpop.xlane.xlu0 %316
    %318 = vmax.index.xlane.f32.xlu0 %v270
    %v319 = vpop.xlane.xlu0 %318
    %320 = vmax.index.xlane.f32.xlu0 %v275
    %v321 = vpop.xlane.xlu0 %320
    %322 = vmax.index.xlane.f32.xlu0 %v280
    %v323 = vpop.xlane.xlu0 %322
    %324 = vmax.index.xlane.f32.xlu0 %v285
    %v325 = vpop.xlane.xlu0 %324
    %326 = vmax.index.xlane.f32.xlu0 %v290
    %v327 = vpop.xlane.xlu0 %326
    %328 = vmax.index.xlane.f32.xlu0 %v295
    %v329 = vpop.xlane.xlu0 %328
    %v330 = vlaneseq
    %v331 = vand.u32 %v330, 127
    %v332 = vlaneseq
    %v333 = vshrl.u32 %v332, 7
    %v334 = vsub.s32 %v331, %v333
    %v335 = vrot.slane %v299, %v334
    %v336 = vadd.s32 %v331, 4294967288
    %v337 = vlaneseq
    %v338 = vshrl.u32 %v337, 7
    %v339 = vsub.s32 %v336, %v338
    %v340 = vrot.slane %v301, %v339
    %vm341 = vcmask 130112
    %v342 = vsel %vm341, %v340, %v335
    %v343 = vadd.s32 %v331, 4294967280
    %v344 = vlaneseq
    %v345 = vshrl.u32 %v344, 7
    %v346 = vsub.s32 %v343, %v345
    %v347 = vrot.slane %v303, %v346
    %vm348 = vcmask 195712
    %v349 = vsel %vm348, %v347, %v342
    %v350 = vadd.s32 %v331, 4294967272
    %v351 = vlaneseq
    %v352 = vshrl.u32 %v351, 7
    %v353 = vsub.s32 %v350, %v352
    %v354 = vrot.slane %v305, %v353
    %vm355 = vcmask 261312
    %v356 = vsel %vm355, %v354, %v349
    %v357 = vadd.s32 %v331, 4294967264
    %v358 = vlaneseq
    %v359 = vshrl.u32 %v358, 7
    %v360 = vsub.s32 %v357, %v359
    %v361 = vrot.slane %v307, %v360
    %vm362 = vcmask 326912
    %v363 = vsel %vm362, %v361, %v356
    %v364 = vadd.s32 %v331, 4294967256
    %v365 = vlaneseq
    %v366 = vshrl.u32 %v365, 7
    %v367 = vsub.s32 %v364, %v366
    %v368 = vrot.slane %v309, %v367
    %vm369 = vcmask 392512
    %v370 = vsel %vm369, %v368, %v363
    %v371 = vadd.s32 %v331, 4294967248
    %v372 = vlaneseq
    %v373 = vshrl.u32 %v372, 7
    %v374 = vsub.s32 %v371, %v373
    %v375 = vrot.slane %v311, %v374
    %vm376 = vcmask 458112
    %v377 = vsel %vm376, %v375, %v370
    %v378 = vadd.s32 %v331, 4294967240
    %v379 = vlaneseq
    %v380 = vshrl.u32 %v379, 7
    %v381 = vsub.s32 %v378, %v380
    %v382 = vrot.slane %v313, %v381
    %vm383 = vcmask 523712
    %v384 = vsel %vm383, %v382, %v377
    %v385 = vadd.s32 %v331, 4294967232
    %v386 = vlaneseq
    %v387 = vshrl.u32 %v386, 7
    %v388 = vsub.s32 %v385, %v387
    %v389 = vrot.slane %v315, %v388
    %vm390 = vcmask 589312
    %v391 = vsel %vm390, %v389, %v384
    %v392 = vadd.s32 %v331, 4294967224
    %v393 = vlaneseq
    %v394 = vshrl.u32 %v393, 7
    %v395 = vsub.s32 %v392, %v394
    %v396 = vrot.slane %v317, %v395
    %vm397 = vcmask 654912
    %v398 = vsel %vm397, %v396, %v391
    %v399 = vadd.s32 %v331, 4294967216
    %v400 = vlaneseq
    %v401 = vshrl.u32 %v400, 7
    %v402 = vsub.s32 %v399, %v401
    %v403 = vrot.slane %v319, %v402
    %vm404 = vcmask 720512
    %v405 = vsel %vm404, %v403, %v398
    %v406 = vadd.s32 %v331, 4294967208
    %v407 = vlaneseq
    %v408 = vshrl.u32 %v407, 7
    %v409 = vsub.s32 %v406, %v408
    %v410 = vrot.slane %v321, %v409
    %vm411 = vcmask 786112
    %v412 = vsel %vm411, %v410, %v405
    %v413 = vadd.s32 %v331, 4294967200
    %v414 = vlaneseq
    %v415 = vshrl.u32 %v414, 7
    %v416 = vsub.s32 %v413, %v415
    %v417 = vrot.slane %v323, %v416
    %vm418 = vcmask 851712
    %v419 = vsel %vm418, %v417, %v412
    %v420 = vadd.s32 %v331, 4294967192
    %v421 = vlaneseq
    %v422 = vshrl.u32 %v421, 7
    %v423 = vsub.s32 %v420, %v422
    %v424 = vrot.slane %v325, %v423
    %vm425 = vcmask 917312
    %v426 = vsel %vm425, %v424, %v419
    %v427 = vadd.s32 %v331, 4294967184
    %v428 = vlaneseq
    %v429 = vshrl.u32 %v428, 7
    %v430 = vsub.s32 %v427, %v429
    %v431 = vrot.slane %v327, %v430
    %vm432 = vcmask 982912
    %v433 = vsel %vm432, %v431, %v426
    %v434 = vadd.s32 %v331, 4294967176
    %v435 = vlaneseq
    %v436 = vshrl.u32 %v435, 7
    %v437 = vsub.s32 %v434, %v436
    %v438 = vrot.slane %v329, %v437
    %vm439 = vcmask 1048512
    %v440 = vsel %vm439, %v438, %v433
    %441 = vst [vmem:[#allocation2] sm:$0x1] %v440
    %vm442 = vcmp.eq.s32.totalorder %v331, %v299
    %vm443 = vcmp.eq.s32.totalorder %v331, %v301
    %vm444 = vcmp.eq.s32.totalorder %v331, %v303
    %vm445 = vcmp.eq.s32.totalorder %v331, %v305
    %vm446 = vcmp.eq.s32.totalorder %v331, %v307
    %vm447 = vcmp.eq.s32.totalorder %v331, %v309
    %vm448 = vcmp.eq.s32.totalorder %v331, %v311
    %vm449 = vcmp.eq.s32.totalorder %v331, %v313
    %vm450 = vcmp.eq.s32.totalorder %v331, %v315
    %vm451 = vcmp.eq.s32.totalorder %v331, %v317
    %vm452 = vcmp.eq.s32.totalorder %v331, %v319
    %vm453 = vcmp.eq.s32.totalorder %v331, %v321
    %vm454 = vcmp.eq.s32.totalorder %v331, %v323
    %vm455 = vcmp.eq.s32.totalorder %v331, %v325
    %vm456 = vcmp.eq.s32.totalorder %v331, %v327
    %vm457 = vcmp.eq.s32.totalorder %v331, %v329
    %v458 = vsel %vm442, 1, 0
    %v459 = vsel %vm443, 1, 0
    %v460 = vsel %vm444, 1, 0
    %v461 = vsel %vm445, 1, 0
    %v462 = vsel %vm446, 1, 0
    %v463 = vsel %vm447, 1, 0
    %v464 = vsel %vm448, 1, 0
    %v465 = vsel %vm449, 1, 0
    %v466 = vsel %vm450, 1, 0
    %v467 = vsel %vm451, 1, 0
    %v468 = vsel %vm452, 1, 0
    %v469 = vsel %vm453, 1, 0
    %v470 = vsel %vm454, 1, 0
    %v471 = vsel %vm455, 1, 0
    %v472 = vsel %vm456, 1, 0
    %v473 = vsel %vm457, 1, 0
    %v474 = vcvt.s32.f32 %v458
    %v475 = vcvt.s32.f32 %v459
    %v476 = vcvt.s32.f32 %v460
    %v477 = vcvt.s32.f32 %v461
    %v478 = vcvt.s32.f32 %v462
    %v479 = vcvt.s32.f32 %v463
    %v480 = vcvt.s32.f32 %v464
    %v481 = vcvt.s32.f32 %v465
    %v482 = vcvt.s32.f32 %v466
    %v483 = vcvt.s32.f32 %v467
    %v484 = vcvt.s32.f32 %v468
    %v485 = vcvt.s32.f32 %v469
    %v486 = vcvt.s32.f32 %v470
    %v487 = vcvt.s32.f32 %v471
    %v488 = vcvt.s32.f32 %v472
    %v489 = vcvt.s32.f32 %v473
    %490 = vmatprep.subr.mxu0 0.0
    %491 = vmatpush1.msra.mxu0 %v48
    %492 = vmatprep.subr.mxu0 0.0
    %493 = vmatpush1.msra.mxu0 %v47
    %494 = vmatprep.subr.mxu0 0.0
    %495 = vmatpush1.msra.mxu0 %v46
    %496 = vmatprep.subr.mxu0 0.0
    %497 = vmatpush1.msra.mxu0 %v45
    %498 = vmatprep.subr.mxu0 0.0
    %499 = vmatpush1.msra.mxu0 %v44
    %500 = vmatprep.subr.mxu0 0.0
    %501 = vmatpush1.msra.mxu0 %v43
    %502 = vmatprep.subr.mxu0 0.0
    %503 = vmatpush1.msra.mxu0 %v42
    %504 = vmatprep.subr.mxu0 0.0
    %505 = vmatpush1.msra.mxu0 %v41
    %506 = vmatprep.subr.mxu0 0.0
    %507 = vmatpush1.msra.mxu0 %v40
    %508 = vmatprep.subr.mxu0 0.0
    %509 = vmatpush1.msra.mxu0 %v39
    %510 = vmatprep.subr.mxu0 0.0
    %511 = vmatpush1.msra.mxu0 %v38
    %512 = vmatprep.subr.mxu0 0.0
    %513 = vmatpush1.msra.mxu0 %v37
    %514 = vmatprep.subr.mxu0 0.0
    %515 = vmatpush1.msra.mxu0 %v36
    %516 = vmatprep.subr.mxu0 0.0
    %517 = vmatpush1.msra.mxu0 %v35
    %518 = vmatprep.subr.mxu0 0.0
    %519 = vmatpush1.msra.mxu0 %v34
    %520 = vmatprep.subr.mxu0 0.0
    %521 = vmatpush1.msra.mxu0 %v33
    %522 = vmatprep.subr.mxu0 0.0
    %523 = vmatpush2.msra.mxu0 0.0
    %524 = vmatprep.subr.mxu0 0.0
    %525 = vmatpush2.msra.mxu0 0.0
    %526 = vmatprep.subr.mxu0 0.0
    %527 = vmatpush2.msra.mxu0 0.0
    %528 = vmatprep.subr.mxu0 0.0
    %529 = vmatpush2.msra.mxu0 0.0
    %530 = vmatprep.subr.mxu0 0.0
    %531 = vmatpush2.msra.mxu0 0.0
    %532 = vmatprep.subr.mxu0 0.0
    %533 = vmatpush2.msra.mxu0 0.0
    %534 = vmatprep.subr.mxu0 0.0
    %535 = vmatpush2.msra.mxu0 0.0
    %536 = vmatprep.subr.mxu0 0.0
    %537 = vmatpush2.msra.mxu0 0.0
    %538 = vmatprep.subr.mxu0 0.0
    %539 = vmatpush2.msra.mxu0 0.0
    %540 = vmatprep.subr.mxu0 0.0
    %541 = vmatpush2.msra.mxu0 0.0
    %542 = vmatprep.subr.mxu0 0.0
    %543 = vmatpush2.msra.mxu0 0.0
    %544 = vmatprep.subr.mxu0 0.0
    %545 = vmatpush2.msra.mxu0 0.0
    %546 = vmatprep.subr.mxu0 0.0
    %547 = vmatpush2.msra.mxu0 0.0
    %548 = vmatprep.subr.mxu0 0.0
    %549 = vmatpush2.msra.mxu0 0.0
    %550 = vmatprep.subr.mxu0 0.0
    %551 = vmatpush2.msra.mxu0 0.0
    %552 = vmatprep.subr.mxu0 0.0
    %553 = vmatpush2.msra.mxu0 0.0
    %554 = vmatprep.mubr.f32.mxu0 0.0
    %555 = vmatmul.mubr.f32.gmra.mxu0 %v474
    %v556 = vpop.f32.mrf.mxu0
    %v557 = vadd.f32 0.0, %v556
    %v558 = vpop.f32.mrf.mxu0
    %559 = vmatprep.mubr.f32.mxu0 0.0
    %560 = vmatmul.mubr.f32.gmra.mxu0 %v475
    %v561 = vpop.f32.mrf.mxu0
    %v562 = vadd.f32 0.0, %v561
    %v563 = vpop.f32.mrf.mxu0
    %564 = vmatprep.mubr.f32.mxu0 0.0
    %565 = vmatmul.mubr.f32.gmra.mxu0 %v476
    %v566 = vpop.f32.mrf.mxu0
    %v567 = vadd.f32 0.0, %v566
    %v568 = vpop.f32.mrf.mxu0
    %569 = vmatprep.mubr.f32.mxu0 0.0
    %570 = vmatmul.mubr.f32.gmra.mxu0 %v477
    %v571 = vpop.f32.mrf.mxu0
    %v572 = vadd.f32 0.0, %v571
    %v573 = vpop.f32.mrf.mxu0
    %574 = vmatprep.mubr.f32.mxu0 0.0
    %575 = vmatmul.mubr.f32.gmra.mxu0 %v478
    %v576 = vpop.f32.mrf.mxu0
    %v577 = vadd.f32 0.0, %v576
    %v578 = vpop.f32.mrf.mxu0
    %579 = vmatprep.mubr.f32.mxu0 0.0
    %580 = vmatmul.mubr.f32.gmra.mxu0 %v479
    %v581 = vpop.f32.mrf.mxu0
    %v582 = vadd.f32 0.0, %v581
    %v583 = vpop.f32.mrf.mxu0
    %584 = vmatprep.mubr.f32.mxu0 0.0
    %585 = vmatmul.mubr.f32.gmra.mxu0 %v480
    %v586 = vpop.f32.mrf.mxu0
    %v587 = vadd.f32 0.0, %v586
    %v588 = vpop.f32.mrf.mxu0
    %589 = vmatprep.mubr.f32.mxu0 0.0
    %590 = vmatmul.mubr.f32.gmra.mxu0 %v481
    %v591 = vpop.f32.mrf.mxu0
    %v592 = vadd.f32 0.0, %v591
    %v593 = vpop.f32.mrf.mxu0
    %594 = vmatprep.mubr.f32.mxu0 0.0
    %595 = vmatmul.mubr.f32.gmra.mxu0 %v482
    %v596 = vpop.f32.mrf.mxu0
    %v597 = vadd.f32 0.0, %v596
    %v598 = vpop.f32.mrf.mxu0
    %599 = vmatprep.mubr.f32.mxu0 0.0
    %600 = vmatmul.mubr.f32.gmra.mxu0 %v483
    %v601 = vpop.f32.mrf.mxu0
    %v602 = vadd.f32 0.0, %v601
    %v603 = vpop.f32.mrf.mxu0
    %604 = vmatprep.mubr.f32.mxu0 0.0
    %605 = vmatmul.mubr.f32.gmra.mxu0 %v484
    %v606 = vpop.f32.mrf.mxu0
    %v607 = vadd.f32 0.0, %v606
    %v608 = vpop.f32.mrf.mxu0
    %609 = vmatprep.mubr.f32.mxu0 0.0
    %610 = vmatmul.mubr.f32.gmra.mxu0 %v485
    %v611 = vpop.f32.mrf.mxu0
    %v612 = vadd.f32 0.0, %v611
    %v613 = vpop.f32.mrf.mxu0
    %614 = vmatprep.mubr.f32.mxu0 0.0
    %615 = vmatmul.mubr.f32.gmra.mxu0 %v486
    %v616 = vpop.f32.mrf.mxu0
    %v617 = vadd.f32 0.0, %v616
    %v618 = vpop.f32.mrf.mxu0
    %619 = vmatprep.mubr.f32.mxu0 0.0
    %620 = vmatmul.mubr.f32.gmra.mxu0 %v487
    %v621 = vpop.f32.mrf.mxu0
    %v622 = vadd.f32 0.0, %v621
    %v623 = vpop.f32.mrf.mxu0
    %624 = vmatprep.mubr.f32.mxu0 0.0
    %625 = vmatmul.mubr.f32.gmra.mxu0 %v488
    %v626 = vpop.f32.mrf.mxu0
    %v627 = vadd.f32 0.0, %v626
    %v628 = vpop.f32.mrf.mxu0
    %629 = vmatprep.mubr.f32.mxu0 0.0
    %630 = vmatmul.mubr.f32.gmra.mxu0 %v489
    %v631 = vpop.f32.mrf.mxu0
    %v632 = vadd.f32 0.0, %v631
    %v633 = vpop.f32.mrf.mxu0
    %634 = vdwg.mxu0
    %635 = vst.msk [vmem:[%s3] sm:$0xff] %vm56, %v557
    %636 = vst.msk [vmem:[%s3 + $0x8] sm:$0xff] %vm56, %v562
    %637 = vst.msk [vmem:[%s3 + $0x10] sm:$0xff] %vm56, %v567
    %638 = vst.msk [vmem:[%s3 + $0x18] sm:$0xff] %vm56, %v572
    %639 = vst.msk [vmem:[%s3 + $0x20] sm:$0xff] %vm56, %v577
    %640 = vst.msk [vmem:[%s3 + $0x28] sm:$0xff] %vm56, %v582
    %641 = vst.msk [vmem:[%s3 + $0x30] sm:$0xff] %vm56, %v587
    %642 = vst.msk [vmem:[%s3 + $0x38] sm:$0xff] %vm56, %v592
    %643 = vst.msk [vmem:[%s3 + $0x40] sm:$0xff] %vm56, %v597
    %644 = vst.msk [vmem:[%s3 + $0x48] sm:$0xff] %vm56, %v602
    %645 = vst.msk [vmem:[%s3 + $0x50] sm:$0xff] %vm56, %v607
    %646 = vst.msk [vmem:[%s3 + $0x58] sm:$0xff] %vm56, %v612
    %647 = vst.msk [vmem:[%s3 + $0x60] sm:$0xff] %vm56, %v617
    %648 = vst.msk [vmem:[%s3 + $0x68] sm:$0xff] %vm56, %v622
    %649 = vst.msk [vmem:[%s3 + $0x70] sm:$0xff] %vm56, %v627
    %650 = vst.msk [vmem:[%s3 + $0x78] sm:$0xff] %vm56, %v632
    // Predicated region
    $region14: #{tpu_custom_call.1} parent=1 // pred_check
      _
    $region15: #{tpu_custom_call.1} parent=1 // pred_check_branch
      %652 = sbr.rel (0) target = $region17
    $region16: #{tpu_custom_call.1} parent=1 // pred_region
      _
    $region17: #{tpu_custom_call.1} parent=1 // pred_fallthru
      _
    // Predicated region
    $region18: #{tpu_custom_call.1} parent=1 // pred_check
      _
    $region19: #{tpu_custom_call.1} parent=1 // pred_check_branch
      %654 = sbr.rel (0) target = $region21
    $region20: #{tpu_custom_call.1} parent=1 // pred_region
      %s656 = ssub.s32 16, 16
      %657 = vsyncadd [#allocation3], %s656
      %s659 = sshll.u32 [#allocation2], 4
      %s660 = int_to_ptr.vmem [resolvable:$true] %s659
      %662 = dma.vmem_to_hbm [thread:$0]  %s660, 16, %s4, [#allocation3]
    $region21: #{tpu_custom_call.1} parent=1 // pred_fallthru
      _
    // Predicated region
    $region22: #{tpu_custom_call.1} parent=1 // pred_check
      _
    $region23: #{tpu_custom_call.1} parent=1 // pred_check_branch
      %664 = sbr.rel (0) target = $region25
    $region24: #{tpu_custom_call.1} parent=1 // pred_region
      _
    $region25: #{tpu_custom_call.1} parent=1 // pred_fallthru
      _
    // Predicated region
    $region26: #{tpu_custom_call.1} parent=1 // pred_check
      _
    $region27: #{tpu_custom_call.1} parent=1 // pred_check_branch
      %666 = sbr.rel (0) target = $region29
    $region28: #{tpu_custom_call.1} parent=1 // pred_region
      %667 = dma.done [#allocation3], 16
    $region29: #{tpu_custom_call.1} parent=1 // pred_fallthru
      _
    %668 = vsyncpa [#allocation3], 1

</llo_original>
